<compile_context>
chip_gen: v7x
topology: tpu7x:2x2x1
jax: 0.10.0
libtpu: 0.0.40
codegen_flags: <defaults>
</compile_context>

<pallas_src>
import functools

import jax
import jax.numpy as jnp
from jax import lax
from jax.experimental import pallas as pl
from jax.experimental.pallas import tpu as pltpu


def _round_up(x, m):
    return ((x + m - 1) // m) * m


def _cdiv(a, b):
    return -(-a // b)


# ----------------------------- Pallas kernel --------------------------------
def _matmul_bias_kernel(p_ref, w_ref, b_ref, o_ref):
    """One (tm, tn) f32 output tile; K reduced over grid axis 2.

    The output block is resident across the K axis (its index_map ignores k),
    so it doubles as the f32 accumulator: init with the broadcast bias at
    k == 0, accumulate one MXU dot per K step, nothing to finalize.
    """
    k = pl.program_id(2)

    @pl.when(k == 0)
    def _():
        o_ref[...] = jnp.broadcast_to(b_ref[...], o_ref.shape)

    o_ref[...] += jnp.dot(p_ref[...], w_ref[...],
                          preferred_element_type=jnp.float32)


def _matmul_bias(patches, w2d, bias, *, tm_target=512):
    """patches (M, K) @ w2d (K, O) + bias (O,) -> (M, O) f32 via Pallas."""
    M, K = patches.shape
    O = w2d.shape[1]

    # --- contraction (K) tiling: skip the zero-pad when K fits one block ----
    if K <= 1024:
        Kp, tk = K, K
    else:
        Kp = _round_up(K, 128)
        tk = max(t for t in (512, 384, 256, 128) if Kp % t == 0)

    # --- output-channel (N) tiling: lane-dense, single block when possible --
    Op = _round_up(O, 128)
    if Op <= 512:
        tn = Op
    else:
        tn = max(t for t in (512, 384, 256, 128) if Op % t == 0)

    # --- M tiling: balanced tile (multiple of 8) -> at most 7 dead rows -----
    tm = _round_up(_cdiv(M, max(1, _cdiv(M, tm_target))), 8)
    # v7x shards the parallel grid axes over 2 TensorCores: keep >= 2 steps.
    if (_cdiv(M, tm) * (Op // tn)) < 2 and M > 8:
        tm = _round_up(_cdiv(M, 2), 8)
    Mp = _round_up(M, tm)

    # bf16 MXU operands, f32 accumulation.  The cast + (minimal) pad are fused
    # into the pallas_call inputs via allow_input_fusion, so no padded HBM
    # copy of the im2col array is materialized.
    patches_p = patches.astype(jnp.bfloat16)
    if (Mp, Kp) != (M, K):
        patches_p = jnp.pad(patches_p, ((0, Mp - M), (0, Kp - K)))
    w_p = w2d.astype(jnp.bfloat16)
    if (Kp, Op) != (K, O):
        w_p = jnp.pad(w_p, ((0, Kp - K), (0, Op - O)))
    b_p = jnp.pad(bias.astype(jnp.float32), (0, Op - O)).reshape(1, Op)

    grid = (Mp // tm, Op // tn, Kp // tk)

    # Double-buffered VMEM footprint (+ headroom), capped for v7x (64 MiB).
    buf_bytes = 2 * (tm * tk * 2 + tk * tn * 2 + 8 * tn * 4 + tm * tn * 4)
    vmem_limit = min(max(2 * buf_bytes, 32 * 1024 * 1024), 48 * 1024 * 1024)

    cost = pl.CostEstimate(
        flops=2 * Mp * Kp * Op,
        transcendentals=0,
        bytes_accessed=Mp * Kp * 2 + Kp * Op * 2 + Mp * Op * 4 + Op * 4,
    )

    out = pl.pallas_call(
        _matmul_bias_kernel,
        out_shape=jax.ShapeDtypeStruct((Mp, Op), jnp.float32),
        grid_spec=pltpu.PrefetchScalarGridSpec(
            num_scalar_prefetch=0,
            grid=grid,
            in_specs=[
                pl.BlockSpec((tm, tk), lambda i, j, k: (i, k)),
                pl.BlockSpec((tk, tn), lambda i, j, k: (k, j)),
                pl.BlockSpec((1, tn), lambda i, j, k: (0, j)),
            ],
            out_specs=pl.BlockSpec((tm, tn), lambda i, j, k: (i, j)),
        ),
        compiler_params=pltpu.CompilerParams(
            dimension_semantics=("parallel", "parallel", "arbitrary"),
            allow_input_fusion=[True, True, True],
            vmem_limit_bytes=vmem_limit,
        ),
        cost_estimate=cost,
    )(patches_p, w_p, b_p)

    return out[:M, :O]


# ------------------------------ Conv2d wrapper -------------------------------
def _same_pad(size, k, s):
    out = _cdiv(size, s)
    pad = max((out - 1) * s + k - size, 0)
    return out, pad // 2, pad - pad // 2


@functools.partial(jax.jit,
                   static_argnames=("k", "s", "padding", "data_format"))
def _conv2d_forward(x, weight, bias, *, k, s, padding, data_format):
    kh, kw = k
    sh, sw = s
    O, C = weight.shape[:2]

    nhwc_in = data_format == "NHWC"
    if nhwc_in:
        N, H, W, _ = x.shape
        dn = ("NHWC", "HWIO", "NHWC")     # stay channels-last, no transposes
    else:
        N, _, H, W = x.shape
        dn = ("NCHW", "OIHW", "NHWC")     # patches come out channels-last

    if padding == "SAME":
        OH, pt, pb = _same_pad(H, kh, sh)
        OW, p_l, p_r = _same_pad(W, kw, sw)
    else:  # VALID
        OH, pt, pb = (H - kh) // sh + 1, 0, 0
        OW, p_l, p_r = (W - kw) // sw + 1, 0, 0

    # im2col via XLA patch extraction.  Implicit contract: the feature axis is
    # ordered channel-major (C, kh, kw), matching weight.reshape(O, C*kh*kw).
    patches = lax.conv_general_dilated_patches(
        x, filter_shape=(kh, kw), window_strides=(sh, sw),
        padding=((pt, pb), (p_l, p_r)),
        dimension_numbers=dn)                       # (N, OH, OW, C*kh*kw)
    patches = patches.reshape(N * OH * OW, C * kh * kw)

    w2d = weight.reshape(O, C * kh * kw).T          # (K, O)

    out = _matmul_bias(patches, w2d, bias)          # (M, O) f32
    out = out.reshape(N, OH, OW, O)                 # NHWC

    if not nhwc_in:
        # TODO(synk): drop this transpose when the consumer accepts NHWC.
        out = jnp.transpose(out, (0, 3, 1, 2))      # external contract: NCHW
    return out


class Conv2dPallas:
    """Mirror of the PyTorch Conv2d module (TF-style SAME padding)."""

    def __init__(self, name, input_dim, output_dim, k_h=4, k_w=4, d_h=2,
                 d_w=2, stddev=0.02, data_format='NCHW', padding='SAME',
                 key=None):
        self.name = name
        self.data_format = data_format
        self.padding = padding
        self.k = (k_h, k_w)
        self.s = (d_h, d_w)
        key = jax.random.PRNGKey(0) if key is None else key
        # weight: (O, C, kh, kw) ~ N(0, stddev), bias: zeros (matches init)
        self.weight = stddev * jax.random.normal(
            key, (output_dim, input_dim, k_h, k_w), dtype=jnp.float32)
        self.bias = jnp.zeros((output_dim,), dtype=jnp.float32)

    def __call__(self, x):
        return _conv2d_forward(x, self.weight, self.bias,
                               k=self.k, s=self.s,
                               padding=self.padding,
                               data_format=self.data_format)


# ---------------------------------- main -------------------------------------
if __name__ == "__main__":
    key = jax.random.PRNGKey(0)
    k_x, k_w = jax.random.split(key)

    N, C, H, W = 2, 4, 16, 16
    O = 8

    x = jax.random.normal(k_x, (N, C, H, W), dtype=jnp.float32)

    conv = Conv2dPallas("conv", input_dim=C, output_dim=O, key=k_w)
    y = jax.block_until_ready(conv(x))

    # Reference: XLA conv (f32) with identical TF-SAME padding.
    _, pt, pb = _same_pad(H, 4, 2)
    _, p_l, p_r = _same_pad(W, 4, 2)
    y_ref = lax.conv_general_dilated(
        x, conv.weight, window_strides=(2, 2),
        padding=((pt, pb), (p_l, p_r)),
        dimension_numbers=('NCHW', 'OIHW', 'NCHW'),
    ) + conv.bias.reshape(1, O, 1, 1)

    assert y.shape == (N, O, H // 2, W // 2), y.shape
    # bf16 MXU operands (f32 accumulate) -> bf16-appropriate tolerance.
    err = float(jnp.max(jnp.abs(y - y_ref)))
    assert jnp.allclose(y, y_ref, atol=1e-2, rtol=1e-2), err
    print("KERNEL_OK")
</pallas_src>

<mosaic_0001>
module attributes {stable_mosaic.version = 11 : i64} {
  func.func @_matmul_bias_kernel(%arg0: i32, %arg1: i32, %arg2: i32, %arg3: memref<64x64xbf16, #tpu.memory_space<vmem>>, %arg4: memref<64x128xbf16, #tpu.memory_space<vmem>>, %arg5: memref<1x128xf32, #tpu.memory_space<vmem>>, %arg6: memref<64x128xf32, #tpu.memory_space<vmem>>) attributes {dimension_semantics = [#tpu.dimension_semantics<parallel>, #tpu.dimension_semantics<parallel>, #tpu.dimension_semantics<arbitrary>], iteration_bounds = array<i64: 2, 1, 1>, scalar_prefetch = 0 : i64, scratch_operands = 0 : i64, tpu.core_type = #tpu.core_type<tc>, window_params = [{transform_indices = @transform_0, window_bounds = array<i64: 64, 64>}, {transform_indices = @transform_1, window_bounds = array<i64: 64, 128>}, {transform_indices = @transform_2, window_bounds = array<i64: 1, 128>}, {transform_indices = @transform_3, window_bounds = array<i64: 64, 128>}]} {
    %c0_i32 = arith.constant 0 : i32
    %0 = arith.cmpi eq, %arg2, %c0_i32 : i32
    %1 = arith.extui %0 : i1 to i32
    %c0_i32_0 = arith.constant 0 : i32
    %2 = arith.cmpi ne, %1, %c0_i32_0 : i32
    scf.if %2 {
      %c0_8 = arith.constant 0 : index
      %c0_9 = arith.constant 0 : index
      %9 = vector.load %arg5[%c0_8, %c0_9] : memref<1x128xf32, #tpu.memory_space<vmem>>, vector<1x128xf32>
      %10 = vector.shape_cast %9 : vector<1x128xf32> to vector<1x128xf32>
      %11 = vector.broadcast %10 : vector<1x128xf32> to vector<64x128xf32>
      %c0_10 = arith.constant 0 : index
      %c0_11 = arith.constant 0 : index
      %12 = vector.load %arg6[%c0_10, %c0_11] : memref<64x128xf32, #tpu.memory_space<vmem>>, vector<64x128xf32>
      tpu.vector_store %arg6[%c0_10, %c0_11], %11 {strides = array<i32>} : memref<64x128xf32, #tpu.memory_space<vmem>>, vector<64x128xf32>,
    } else {
    }
    %c0 = arith.constant 0 : index
    %c0_1 = arith.constant 0 : index
    %3 = vector.load %arg6[%c0, %c0_1] : memref<64x128xf32, #tpu.memory_space<vmem>>, vector<64x128xf32>
    %c0_2 = arith.constant 0 : index
    %c0_3 = arith.constant 0 : index
    %4 = vector.load %arg3[%c0_2, %c0_3] : memref<64x64xbf16, #tpu.memory_space<vmem>>, vector<64x64xbf16>
    %c0_4 = arith.constant 0 : index
    %c0_5 = arith.constant 0 : index
    %5 = vector.load %arg4[%c0_4, %c0_5] : memref<64x128xbf16, #tpu.memory_space<vmem>>, vector<64x128xbf16>
    %cst = arith.constant dense<0.000000e+00> : vector<64x128xf32>
    %6 = tpu.matmul %4, %5, %cst {dimension_numbers = #tpu.dot_dimension_numbers<[1], [0], [0], [1], [0, 0, 1, 1], [], []>} : vector<64x64xbf16>, vector<64x128xbf16>, vector<64x128xf32> -> vector<64x128xf32>
    %7 = arith.addf %3, %6 : vector<64x128xf32>
    %c0_6 = arith.constant 0 : index
    %c0_7 = arith.constant 0 : index
    %8 = vector.load %arg6[%c0_6, %c0_7] : memref<64x128xf32, #tpu.memory_space<vmem>>, vector<64x128xf32>
    tpu.vector_store %arg6[%c0_6, %c0_7], %7 {strides = array<i32>} : memref<64x128xf32, #tpu.memory_space<vmem>>, vector<64x128xf32>,
    return
  }
  func.func @transform_0(%arg0: i32, %arg1: i32, %arg2: i32) -> (i32, i32) {
    %c0_i32 = arith.constant 0 : i32
    return %arg0, %arg2 : i32, i32
  }
  func.func @transform_1(%arg0: i32, %arg1: i32, %arg2: i32) -> (i32, i32) {
    %c0_i32 = arith.constant 0 : i32
    return %arg2, %arg1 : i32, i32
  }
  func.func @transform_2(%arg0: i32, %arg1: i32, %arg2: i32) -> (i32, i32) {
    %c0_i32 = arith.constant 0 : i32
    %c0_i32_0 = arith.constant 0 : i32
    return %c0_i32, %arg1 : i32, i32
  }
  func.func @transform_3(%arg0: i32, %arg1: i32, %arg2: i32) -> (i32, i32) {
    %c0_i32 = arith.constant 0 : i32
    return %arg0, %arg1 : i32, i32
  }
}

</mosaic_0001>

<llo_original>
// kernel: _conv2d_forward.2
$region0: #{_conv2d_forward.2}
  #allocation0 [shape = 'u32[]', space=smem, size = 0x4, offset = 0x4, fixed_abs, tag = 'smem constant byte address 0x4 - core index']
  #allocation1 [shape = 'u32[144,128]{1,0:T(1,128)}', space=vmem, size = 0x12000, scoped, tag = 'internal scratch']
  #allocation2 [shape = 'u32[2048]{0}', space=vmem, size = 0x2000, scoped, tag = 'scoped memory for _conv2d_forward.2']
  #allocation3 [shape = 'u32[2048]{0}', space=vmem, size = 0x2000, scoped, tag = 'scoped memory for _conv2d_forward.2']
  #allocation4 [shape = 'u32[2048]{0}', space=vmem, size = 0x2000, scoped, tag = 'scoped memory for _conv2d_forward.2']
  #allocation5 [shape = 'u32[2048]{0}', space=vmem, size = 0x2000, scoped, tag = 'scoped memory for _conv2d_forward.2']
  #allocation6 [shape = 'u32[2048]{0}', space=vmem, size = 0x2000, scoped, tag = 'scoped memory for _conv2d_forward.2']
  #allocation7 [shape = 'u32[2048]{0}', space=vmem, size = 0x2000, scoped, tag = 'scoped memory for _conv2d_forward.2']
  #allocation8 [shape = 'u32[2048]{0}', space=vmem, size = 0x2000, scoped, tag = 'scoped memory for _conv2d_forward.2']
  #allocation9 [shape = 'u32[2048]{0}', space=vmem, size = 0x2000, scoped, tag = 'scoped memory for _conv2d_forward.2']
  #allocation10 [shape = 'u32[2048]{0}', space=vmem, size = 0x2000, scoped, tag = 'scoped memory for _conv2d_forward.2']
  #allocation11 [shape = 'u32[2048]{0}', space=vmem, size = 0x2000, scoped, tag = 'scoped memory for _conv2d_forward.2']
  %s0 = inlined_call_operand.vmem [shape: bf16[128,64], index: 0, kind: input, shape index: {}]
  %s1 = inlined_call_operand.vmem [shape: bf16[64,8], index: 1, kind: input, shape index: {}]
  %s2 = inlined_call_operand.<no memory space> [shape: bf16[], index: 2, kind: input, shape index: {}]
  %s3 = inlined_call_operand.vmem [shape: f32[8], index: 3, kind: input, shape index: {}]
  %s4 = inlined_call_operand.<no memory space> [shape: f32[], index: 4, kind: input, shape index: {}]
  %s5 = inlined_call_operand.vmem [shape: f32[128,128], index: 5, kind: output, shape index: {}]
  %s6 = sld [smem:[#allocation0]]
  $region49: #{_conv2d_forward.2} parent=0
    _
  %s8 = ssub.s32 1, %s6
  %s9 = scalar_select 0, %s8, %s6
  %v10 = vstv %s2
  %v11 = vunpack.i.l.bf16 %v10
  %v13 = vunpack.i.h.bf16 %v10
  %v15 = vstv %s4
  loop: start=0, step=1, limit=4
  $region2: #{_conv2d_forward.2} parent=0 // loop_pre_header
    _
  $region3: #{_conv2d_forward.2} parent=0 // loop_header
    %s17 = sphi 0, %s21
    %p18 = scmp.ge.s32.totalorder %s17, 4
    %s24 = sphi 0, %s43
    %s25 = sphi 0, %s39
    %s26 = sphi 0, %s35
    %s27 = sphi 0, %s24
    %s28 = sphi 0, %s25
    %s29 = sphi 0, %s26
    %s30 = sphi 0, %s27
    %s31 = sphi 0, %s28
    %s32 = sphi 0, %s29
    %s48 = sphi 0, %s50
    %s51 = sphi 0, %s48
    %s52 = sphi 0, %s51
    %s68 = sphi 0, %s52
    %s76 = sphi 0, %s78
    %s79 = sphi 0, %s76
    %s80 = sphi 0, %s79
    %s96 = sphi 0, %s80
    %s100 = sphi 0, %s100
    %s102 = sphi 0, %s100
    %s103 = sphi 0, %s102
    %s117 = sphi 0, %s103
    %s125 = sphi 0, %s127
    %s128 = sphi 0, %s125
    %s129 = sphi 0, %s128
    %s145 = sphi 0, %s129
  $region4: #{_conv2d_forward.2} parent=0 // loop_header_branch
    %20 = sbr.rel (%p18) target = $region8
  $region5: #{_conv2d_forward.2} parent=0 // loop_body
    %s22 = ssub.s32 %s17, 1
    %s23 = ssub.s32 %s17, 2
    %s33 = sadd.s32 1, %s26
    %p34 = scmp.ge.s32.totalorder %s33, 1
    %s35 = scalar_select %p34, 0, %s33
    %s36 = sadd.s32 1, %s25
    %s37 = scalar_select %p34, %s36, %s25
    %p38 = scmp.ge.s32.totalorder %s37, 1
    %s39 = scalar_select %p38, 0, %s37
    %s40 = sadd.s32 1, %s24
    %s41 = scalar_select %p38, %s40, %s24
    %p42 = scmp.ge.s32.totalorder %s41, 2
    %s43 = scalar_select %p42, 0, %s41
    %s44 = ssub.s32 %s24, %s43
    %s45 = ssub.s32 %s26, %s35
    %s46 = sor.u32 %s44, %s45
    %p47 = scmp.eq.s32.totalorder %s46, 0
    %s49 = sadd.s32 %s48, 1
    %s50 = scalar_select %p47, %s48, %s49
    %p53 = pneg %p47
    %p54 = scmp.eq.s32.totalorder %s17, 1
    %p55 = por %p53, %p54
    %p56 = scmp.ne.s32.totalorder %s48, %s51
    %p57 = scmp.eq.s32.totalorder %s17, 0
    %p58 = por %p56, %p57
    %p59 = scmp.ne.s32.totalorder %s48, %s51
    %p60 = scmp.eq.s32.totalorder %s22, 1
    %p61 = por %p59, %p60
    %p62 = scmp.ne.s32.totalorder %s51, %s52
    %p63 = scmp.eq.s32.totalorder %s22, 0
    %p64 = por %p62, %p63
    %p65 = scmp.ne.s32.totalorder %s51, %s52
    %p66 = scmp.eq.s32.totalorder %s23, 1
    %p67 = por %p65, %p66
    %p69 = scmp.ne.s32.totalorder %s52, %s68
    %p70 = scmp.eq.s32.totalorder %s23, 0
    %p71 = por %p69, %p70
    %s72 = ssub.s32 %s26, %s35
    %s73 = ssub.s32 %s25, %s39
    %s74 = sor.u32 %s72, %s73
    %p75 = scmp.eq.s32.totalorder %s74, 0
    %s77 = sadd.s32 %s76, 1
    %s78 = scalar_select %p75, %s76, %s77
    %p81 = pneg %p75
    %p82 = scmp.eq.s32.totalorder %s17, 1
    %p83 = por %p81, %p82
    %p84 = scmp.ne.s32.totalorder %s76, %s79
    %p85 = scmp.eq.s32.totalorder %s17, 0
    %p86 = por %p84, %p85
    %p87 = scmp.ne.s32.totalorder %s76, %s79
    %p88 = scmp.eq.s32.totalorder %s22, 1
    %p89 = por %p87, %p88
    %p90 = scmp.ne.s32.totalorder %s79, %s80
    %p91 = scmp.eq.s32.totalorder %s22, 0
    %p92 = por %p90, %p91
    %p93 = scmp.ne.s32.totalorder %s79, %s80
    %p94 = scmp.eq.s32.totalorder %s23, 1
    %p95 = por %p93, %p94
    %p97 = scmp.ne.s32.totalorder %s80, %s96
    %p98 = scmp.eq.s32.totalorder %s23, 0
    %p99 = por %p97, %p98
    %s101 = sadd.s32 %s100, 1
    %p104 = scmp.eq.s32.totalorder %s17, 1
    %p105 = scmp.ne.s32.totalorder %s100, %s102
    %p106 = scmp.eq.s32.totalorder %s17, 0
    %p107 = por %p105, %p106
    %p108 = scmp.ne.s32.totalorder %s100, %s102
    %p109 = scmp.eq.s32.totalorder %s22, 1
    %p110 = por %p108, %p109
    %p111 = scmp.ne.s32.totalorder %s102, %s103
    %p112 = scmp.eq.s32.totalorder %s22, 0
    %p113 = por %p111, %p112
    %p114 = scmp.ne.s32.totalorder %s102, %s103
    %p115 = scmp.eq.s32.totalorder %s23, 1
    %p116 = por %p114, %p115
    %p118 = scmp.ne.s32.totalorder %s103, %s117
    %p119 = scmp.eq.s32.totalorder %s23, 0
    %p120 = por %p118, %p119
    %s121 = ssub.s32 %s24, %s43
    %s122 = ssub.s32 %s25, %s39
    %s123 = sor.u32 %s121, %s122
    %p124 = scmp.eq.s32.totalorder %s123, 0
    %s126 = sadd.s32 %s125, 1
    %s127 = scalar_select %p124, %s125, %s126
    %p130 = pneg %p124
    %p131 = scmp.eq.s32.totalorder %s17, 1
    %p132 = por %p130, %p131
    %p133 = scmp.ne.s32.totalorder %s125, %s128
    %p134 = scmp.eq.s32.totalorder %s17, 0
    %p135 = por %p133, %p134
    %p136 = scmp.ne.s32.totalorder %s125, %s128
    %p137 = scmp.eq.s32.totalorder %s22, 1
    %p138 = por %p136, %p137
    %p139 = scmp.ne.s32.totalorder %s128, %s129
    %p140 = scmp.eq.s32.totalorder %s22, 0
    %p141 = por %p139, %p140
    %p142 = scmp.ne.s32.totalorder %s128, %s129
    %p143 = scmp.eq.s32.totalorder %s23, 1
    %p144 = por %p142, %p143
    %p146 = scmp.ne.s32.totalorder %s129, %s145
    %p147 = scmp.eq.s32.totalorder %s23, 0
    %p148 = por %p146, %p147
    %p149 = scmp.le.s32.totalorder 1, %s17
    %p150 = scmp.lt.s32.totalorder %s17, 3
    %p151 = pnand %p149, %p150
    %p152 = pneg %p151
    // Predicated region
    $region9: #{_conv2d_forward.2} parent=5 // pred_check
      _
    $region10: #{_conv2d_forward.2} parent=5 // pred_check_branch
      %154 = sbr.rel (%p151) target = $region12
    $region11: #{_conv2d_forward.2} parent=5 // pred_region
      %s155 = ssub.s32 %s17, 1
      // Predicated region
      $region13: #{_conv2d_forward.2} parent=11 // pred_check
        %p156 = pneg %p92
      $region14: #{_conv2d_forward.2} parent=11 // pred_check_branch
        %158 = sbr.rel (%p156) target = $region16
      $region15: #{_conv2d_forward.2} parent=11 // pred_region
        %s159 = smul.u32 8, %s29
        %s160 = ssub.s32 1, %s28
        %s161 = smul.u32 512, %s160
        %p162 = scmp.lt.s32.totalorder %s159, 7
        %s163 = scalar_select %p162, %s159, 7
        %p164 = scmp.lt.s32.totalorder %s28, 0
        %s165 = scalar_select %p164, %s28, 0
        %s166 = sadd.s32 %s165, %s163
        %s167 = smul.addr %s166, 4
        %s168 = scalar_lea.vmem %s1, %s167
        %s169 = smul.u32 8, %s29
        %s170 = ssub.s32 1, %s28
        %s171 = smul.u32 512, %s170
      $region16: #{_conv2d_forward.2} parent=11 // pred_fallthru
        _
      // Predicated region
      $region17: #{_conv2d_forward.2} parent=11 // pred_check
        %p172 = pneg %p113
      $region18: #{_conv2d_forward.2} parent=11 // pred_check_branch
        %174 = sbr.rel (%p172) target = $region20
      $region19: #{_conv2d_forward.2} parent=11 // pred_region
        _
      $region20: #{_conv2d_forward.2} parent=11 // pred_fallthru
        _
    $region12: #{_conv2d_forward.2} parent=5 // pred_fallthru
      _
    %p175 = scmp.lt.s32.totalorder %s17, 2
    // Predicated region
    $region21: #{_conv2d_forward.2} parent=5 // pred_check
      %p176 = pneg %p175
    $region22: #{_conv2d_forward.2} parent=5 // pred_check_branch
      %178 = sbr.rel (%p176) target = $region24
    $region23: #{_conv2d_forward.2} parent=5 // pred_region
      // Predicated region
      $region25: #{_conv2d_forward.2} parent=23 // pred_check
        %p179 = pneg %p58
      $region26: #{_conv2d_forward.2} parent=23 // pred_check_branch
        %181 = sbr.rel (%p179) target = $region28
      $region27: #{_conv2d_forward.2} parent=23 // pred_region
        %s182 = smul.u32 8, %s24
        %p183 = scmp.lt.s32.totalorder %s182, 15
        %s184 = scalar_select %p183, %s182, 15
        %p185 = scmp.lt.s32.totalorder %s26, 0
        %s186 = scalar_select %p185, %s26, 0
        %s187 = sadd.s32 %s186, %s184
        %s188 = smul.addr %s187, 4
        %s189 = scalar_lea.vmem %s0, %s188
        %s190 = smul.u32 8, %s24
      $region28: #{_conv2d_forward.2} parent=23 // pred_fallthru
        _
    $region24: #{_conv2d_forward.2} parent=5 // pred_fallthru
      _
    %p191 = scmp.le.s32.totalorder 1, %s17
    %p192 = scmp.lt.s32.totalorder %s17, 3
    %p193 = pnand %p191, %p192
    %p194 = pneg %p193
    // Predicated region
    $region29: #{_conv2d_forward.2} parent=5 // pred_check
      _
    $region30: #{_conv2d_forward.2} parent=5 // pred_check_branch
      %196 = sbr.rel (%p193) target = $region32
    $region31: #{_conv2d_forward.2} parent=5 // pred_region
      #allocation12 [shape = 'u8[16384]{0}', space=vmem, size = 0x4000, dematerialized = true, scoped, tag = 'FusionAdapter Buffer %fusion.5 = bf16[64,128]{1,0:T(8,128)(2,1)} fusion(%param_1.16, %param_2.13), kind=kLoop, calls=%fused_computation.7.clone, metadata={op_name="jit(_conv2d_forward)/jit(_pad)/pad" stack_frame_id=15}']
      #allocation13 [shape = 'u8[512]{0}', space=vmem, size = 0x400, dematerialized = true, scoped, tag = 'FusionAdapter Buffer %fusion.7 = f32[1,128]{1,0:T(1,128)} fusion(%param_3.8, %param_4), kind=kLoop, calls=%fused_computation.10.clone, metadata={op_name="jit(_conv2d_forward)/reshape" stack_frame_id=17}']
      %s197 = ssub.s32 %s17, 1
      %s198 = smul.u32 8, %s27
      %p199 = scmp.lt.s32.totalorder %s198, 15
      %s200 = scalar_select %p199, %s198, 15
      %p201 = scmp.lt.s32.totalorder %s29, 0
      %s202 = scalar_select %p201, %s29, 0
      %s203 = sadd.s32 %s202, %s200
      %s204 = smul.addr %s203, 4
      %s205 = scalar_lea.vmem %s0, %s204
      %p206 = pneg %p64
      %p207 = pneg %p61
      %s208 = smul.u32 8, %s29
      %s209 = ssub.s32 1, %s28
      %s210 = smul.u32 512, %s209
      %p211 = scmp.lt.s32.totalorder %s208, 7
      %s212 = scalar_select %p211, %s208, 7
      %p213 = scmp.lt.s32.totalorder %s28, 0
      %s214 = scalar_select %p213, %s28, 0
      %s215 = sadd.s32 %s214, %s212
      %s216 = smul.addr %s215, 4
      %s217 = scalar_lea.vmem %s1, %s216
      %p218 = pneg %p92
      %p219 = pneg %p89
      %p220 = pneg %p113
      %p221 = pneg %p110
      %p222 = pneg %p141
      %p223 = pneg %p138
      %s224 = smul.u32 8, %s27
      %p225 = scmp.lt.s32.totalorder %s224, 15
      %s226 = scalar_select %p225, %s224, 15
      %p227 = scmp.lt.s32.totalorder %s28, 0
      %s228 = scalar_select %p227, %s28, 0
      %s229 = sadd.s32 %s228, %s226
      %s230 = smul.addr %s229, 8
      %s231 = scalar_lea.vmem %s5, %s230
      %s232 = smul.u32 8, %s27
      %p233 = scmp.lt.s32.totalorder %s232, 15
      %s234 = scalar_select %p233, %s232, 15
      %p235 = scmp.lt.s32.totalorder %s29, 0
      %s236 = scalar_select %p235, %s29, 0
      %s237 = sadd.s32 %s236, %s234
      %s238 = smul.addr %s237, 4
      %s239 = scalar_lea.vmem %s0, %s238
      %s240 = smul.u32 8, %s27
      %s241 = smul.u32 8, %s29
      %s242 = ssub.s32 1, %s28
      %s243 = smul.u32 512, %s242
      %p244 = scmp.lt.s32.totalorder %s241, 7
      %s245 = scalar_select %p244, %s241, 7
      %p246 = scmp.lt.s32.totalorder %s28, 0
      %s247 = scalar_select %p246, %s28, 0
      %s248 = sadd.s32 %s247, %s245
      %s249 = smul.addr %s248, 4
      %s250 = scalar_lea.vmem %s1, %s249
      %s251 = smul.u32 8, %s29
      %s252 = ssub.s32 1, %s28
      %s253 = smul.u32 512, %s252
      %s254 = smul.u32 8, %s27
      %p255 = scmp.lt.s32.totalorder %s254, 15
      %s256 = scalar_select %p255, %s254, 15
      %p257 = scmp.lt.s32.totalorder %s28, 0
      %s258 = scalar_select %p257, %s28, 0
      %s259 = sadd.s32 %s258, %s256
      %s260 = smul.addr %s259, 8
      %s261 = scalar_lea.vmem %s5, %s260
      %s262 = smul.u32 8, %s27
      %s263 = ssub.s32 0, %s28
      %p264 = scmp.lt.s32.totalorder %s263, 0
      %s265 = scalar_select %p264, 0, 255
      %s266 = sshrl.u32 %s265, 1
      %s267 = sor.u32 %s265, %s266
      %s268 = sand.u32 %s267, 85
      %s269 = sshrl.u32 %s268, 1
      %s270 = sor.u32 %s268, %s269
      %s271 = sand.u32 51, %s270
      %s272 = sshrl.u32 %s271, 2
      %s273 = sor.u32 %s271, %s272
      %s274 = sand.u32 15, %s273
      %v275 = vld [vmem:[%s250] sm:%s274]
      %v276 = vunpack.c.l.bf16 %v275
      %v277 = vunpack.c.h.bf16 %v275
      %s278 = ssub.s32 0, %s28
      %v279 = vstv %s278
      %vm280 = vcmp.lt.s32.totalorder %v279, 0
      %v281 = vsel %vm280, %v11, %v276
      %s282 = smul.addr %s28, 128
      %v283 = vlaneseq
      %v284 = vand.u32 %v283, 127
      %v285 = vstv %s282
      %v286 = vadd.s32 %v284, %v285
      %vm287 = vcmp.lt.s32.totalorder %v286, 8
      %v288 = vsel %vm287, %v281, %v11
      %v289 = vpack.c.bf16 0.0, %v288
      %291 = vst [vmem:[#allocation12] sm:$0xf] %v289
      %s292 = scalar_lea.vmem %s250, 4
      %s293 = ssub.s32 0, %s28
      %p294 = scmp.lt.s32.totalorder %s293, 0
      %s295 = scalar_select %p294, 0, 255
      %s296 = sshrl.u32 %s295, 1
      %s297 = sor.u32 %s295, %s296
      %s298 = sand.u32 %s297, 85
      %s299 = sshrl.u32 %s298, 1
      %s300 = sor.u32 %s298, %s299
      %s301 = sand.u32 51, %s300
      %s302 = sshrl.u32 %s301, 2
      %s303 = sor.u32 %s301, %s302
      %s304 = sand.u32 15, %s303
      %v305 = vld [vmem:[%s292] sm:%s304]
      %v306 = vunpack.c.l.bf16 %v305
      %v307 = vunpack.c.h.bf16 %v305
      %s308 = ssub.s32 0, %s28
      %v309 = vstv %s308
      %vm310 = vcmp.lt.s32.totalorder %v309, 0
      %v311 = vsel %vm310, %v11, %v306
      %s312 = smul.addr %s28, 128
      %v313 = vlaneseq
      %v314 = vand.u32 %v313, 127
      %v315 = vstv %s312
      %v316 = vadd.s32 %v314, %v315
      %vm317 = vcmp.lt.s32.totalorder %v316, 8
      %v318 = vsel %vm317, %v311, %v11
      %s319 = scalar_lea.vmem [#allocation12], 4
      %v320 = vpack.c.bf16 0.0, %v318
      %322 = vst [vmem:[%s319] sm:$0xf] %v320
      %s323 = scalar_lea.vmem %s250, 8
      %s324 = ssub.s32 0, %s28
      %p325 = scmp.lt.s32.totalorder %s324, 0
      %s326 = scalar_select %p325, 0, 255
      %s327 = sshrl.u32 %s326, 1
      %s328 = sor.u32 %s326, %s327
      %s329 = sand.u32 %s328, 85
      %s330 = sshrl.u32 %s329, 1
      %s331 = sor.u32 %s329, %s330
      %s332 = sand.u32 51, %s331
      %s333 = sshrl.u32 %s332, 2
      %s334 = sor.u32 %s332, %s333
      %s335 = sand.u32 15, %s334
      %v336 = vld [vmem:[%s323] sm:%s335]
      %v337 = vunpack.c.l.bf16 %v336
      %v338 = vunpack.c.h.bf16 %v336
      %s339 = ssub.s32 0, %s28
      %v340 = vstv %s339
      %vm341 = vcmp.lt.s32.totalorder %v340, 0
      %v342 = vsel %vm341, %v11, %v337
      %s343 = smul.addr %s28, 128
      %v344 = vlaneseq
      %v345 = vand.u32 %v344, 127
      %v346 = vstv %s343
      %v347 = vadd.s32 %v345, %v346
      %vm348 = vcmp.lt.s32.totalorder %v347, 8
      %v349 = vsel %vm348, %v342, %v11
      %s350 = scalar_lea.vmem [#allocation12], 8
      %v351 = vpack.c.bf16 0.0, %v349
      %353 = vst [vmem:[%s350] sm:$0xf] %v351
      %s354 = scalar_lea.vmem %s250, 12
      %s355 = ssub.s32 0, %s28
      %p356 = scmp.lt.s32.totalorder %s355, 0
      %s357 = scalar_select %p356, 0, 255
      %s358 = sshrl.u32 %s357, 1
      %s359 = sor.u32 %s357, %s358
      %s360 = sand.u32 %s359, 85
      %s361 = sshrl.u32 %s360, 1
      %s362 = sor.u32 %s360, %s361
      %s363 = sand.u32 51, %s362
      %s364 = sshrl.u32 %s363, 2
      %s365 = sor.u32 %s363, %s364
      %s366 = sand.u32 15, %s365
      %v367 = vld [vmem:[%s354] sm:%s366]
      %v368 = vunpack.c.l.bf16 %v367
      %v369 = vunpack.c.h.bf16 %v367
      %s370 = ssub.s32 0, %s28
      %v371 = vstv %s370
      %vm372 = vcmp.lt.s32.totalorder %v371, 0
      %v373 = vsel %vm372, %v11, %v368
      %s374 = smul.addr %s28, 128
      %v375 = vlaneseq
      %v376 = vand.u32 %v375, 127
      %v377 = vstv %s374
      %v378 = vadd.s32 %v376, %v377
      %vm379 = vcmp.lt.s32.totalorder %v378, 8
      %v380 = vsel %vm379, %v373, %v11
      %s381 = scalar_lea.vmem [#allocation12], 12
      %v382 = vpack.c.bf16 0.0, %v380
      %384 = vst [vmem:[%s381] sm:$0xf] %v382
      %s385 = scalar_lea.vmem %s250, 16
      %s386 = ssub.s32 0, %s28
      %p387 = scmp.lt.s32.totalorder %s386, 0
      %s388 = scalar_select %p387, 0, 255
      %s389 = sshrl.u32 %s388, 1
      %s390 = sor.u32 %s388, %s389
      %s391 = sand.u32 %s390, 85
      %s392 = sshrl.u32 %s391, 1
      %s393 = sor.u32 %s391, %s392
      %s394 = sand.u32 51, %s393
      %s395 = sshrl.u32 %s394, 2
      %s396 = sor.u32 %s394, %s395
      %s397 = sand.u32 15, %s396
      %v398 = vld [vmem:[%s385] sm:%s397]
      %v399 = vunpack.c.l.bf16 %v398
      %v400 = vunpack.c.h.bf16 %v398
      %s401 = ssub.s32 0, %s28
      %v402 = vstv %s401
      %vm403 = vcmp.lt.s32.totalorder %v402, 0
      %v404 = vsel %vm403, %v11, %v399
      %s405 = smul.addr %s28, 128
      %v406 = vlaneseq
      %v407 = vand.u32 %v406, 127
      %v408 = vstv %s405
      %v409 = vadd.s32 %v407, %v408
      %vm410 = vcmp.lt.s32.totalorder %v409, 8
      %v411 = vsel %vm410, %v404, %v11
      %s412 = scalar_lea.vmem [#allocation12], 16
      %v413 = vpack.c.bf16 0.0, %v411
      %415 = vst [vmem:[%s412] sm:$0xf] %v413
      %s416 = scalar_lea.vmem %s250, 20
      %s417 = ssub.s32 0, %s28
      %p418 = scmp.lt.s32.totalorder %s417, 0
      %s419 = scalar_select %p418, 0, 255
      %s420 = sshrl.u32 %s419, 1
      %s421 = sor.u32 %s419, %s420
      %s422 = sand.u32 %s421, 85
      %s423 = sshrl.u32 %s422, 1
      %s424 = sor.u32 %s422, %s423
      %s425 = sand.u32 51, %s424
      %s426 = sshrl.u32 %s425, 2
      %s427 = sor.u32 %s425, %s426
      %s428 = sand.u32 15, %s427
      %v429 = vld [vmem:[%s416] sm:%s428]
      %v430 = vunpack.c.l.bf16 %v429
      %v431 = vunpack.c.h.bf16 %v429
      %s432 = ssub.s32 0, %s28
      %v433 = vstv %s432
      %vm434 = vcmp.lt.s32.totalorder %v433, 0
      %v435 = vsel %vm434, %v11, %v430
      %s436 = smul.addr %s28, 128
      %v437 = vlaneseq
      %v438 = vand.u32 %v437, 127
      %v439 = vstv %s436
      %v440 = vadd.s32 %v438, %v439
      %vm441 = vcmp.lt.s32.totalorder %v440, 8
      %v442 = vsel %vm441, %v435, %v11
      %s443 = scalar_lea.vmem [#allocation12], 20
      %v444 = vpack.c.bf16 0.0, %v442
      %446 = vst [vmem:[%s443] sm:$0xf] %v444
      %s447 = scalar_lea.vmem %s250, 24
      %s448 = ssub.s32 0, %s28
      %p449 = scmp.lt.s32.totalorder %s448, 0
      %s450 = scalar_select %p449, 0, 255
      %s451 = sshrl.u32 %s450, 1
      %s452 = sor.u32 %s450, %s451
      %s453 = sand.u32 %s452, 85
      %s454 = sshrl.u32 %s453, 1
      %s455 = sor.u32 %s453, %s454
      %s456 = sand.u32 51, %s455
      %s457 = sshrl.u32 %s456, 2
      %s458 = sor.u32 %s456, %s457
      %s459 = sand.u32 15, %s458
      %v460 = vld [vmem:[%s447] sm:%s459]
      %v461 = vunpack.c.l.bf16 %v460
      %v462 = vunpack.c.h.bf16 %v460
      %s463 = ssub.s32 0, %s28
      %v464 = vstv %s463
      %vm465 = vcmp.lt.s32.totalorder %v464, 0
      %v466 = vsel %vm465, %v11, %v461
      %s467 = smul.addr %s28, 128
      %v468 = vlaneseq
      %v469 = vand.u32 %v468, 127
      %v470 = vstv %s467
      %v471 = vadd.s32 %v469, %v470
      %vm472 = vcmp.lt.s32.totalorder %v471, 8
      %v473 = vsel %vm472, %v466, %v11
      %s474 = scalar_lea.vmem [#allocation12], 24
      %v475 = vpack.c.bf16 0.0, %v473
      %477 = vst [vmem:[%s474] sm:$0xf] %v475
      %s478 = scalar_lea.vmem %s250, 28
      %s479 = ssub.s32 0, %s28
      %p480 = scmp.lt.s32.totalorder %s479, 0
      %s481 = scalar_select %p480, 0, 255
      %s482 = sshrl.u32 %s481, 1
      %s483 = sor.u32 %s481, %s482
      %s484 = sand.u32 %s483, 85
      %s485 = sshrl.u32 %s484, 1
      %s486 = sor.u32 %s484, %s485
      %s487 = sand.u32 51, %s486
      %s488 = sshrl.u32 %s487, 2
      %s489 = sor.u32 %s487, %s488
      %s490 = sand.u32 15, %s489
      %v491 = vld [vmem:[%s478] sm:%s490]
      %v492 = vunpack.c.l.bf16 %v491
      %v493 = vunpack.c.h.bf16 %v491
      %s494 = ssub.s32 0, %s28
      %v495 = vstv %s494
      %vm496 = vcmp.lt.s32.totalorder %v495, 0
      %v497 = vsel %vm496, %v11, %v492
      %s498 = smul.addr %s28, 128
      %v499 = vlaneseq
      %v500 = vand.u32 %v499, 127
      %v501 = vstv %s498
      %v502 = vadd.s32 %v500, %v501
      %vm503 = vcmp.lt.s32.totalorder %v502, 8
      %v504 = vsel %vm503, %v497, %v11
      %s505 = scalar_lea.vmem [#allocation12], 28
      %v506 = vpack.c.bf16 0.0, %v504
      %508 = vst [vmem:[%s505] sm:$0xf] %v506
      %v509 = vld [vmem:[%s3] sm:$0x1]
      %v510 = vlaneseq
      %vm512 = vcmp.lt.s32.totalorder %v510, 8
      %v513 = vsel %vm512, %v509, %v15
      %515 = vst [vmem:[#allocation13] sm:$0x1] %v513
      %p517 = scmp.eq.s32.totalorder %s29, 0
      // Predicated region
      $region33: #{_conv2d_forward.2} parent=31 // pred_check
        %p518 = pneg %p517
      $region34: #{_conv2d_forward.2} parent=31 // pred_check_branch
        %520 = sbr.rel (%p518) target = $region36
      $region35: #{_conv2d_forward.2} parent=31 // pred_region
        %v521 = vld [vmem:[#allocation13] sm:$0x1]
        %v523 = vlaneseq
        %v524 = vshrl.u32 %v523, 7
        %v525 = vsub.s32 0, %v524
        %v526 = vrot.slane %v521, %v525
        %528 = vst [vmem:[%s261] sm:$0xff] %v526
        %529 = vst [vmem:[%s261 + $0x8] sm:$0xff] %v526
        %530 = vst [vmem:[%s261 + $0x10] sm:$0xff] %v526
        %531 = vst [vmem:[%s261 + $0x18] sm:$0xff] %v526
        %532 = vst [vmem:[%s261 + $0x20] sm:$0xff] %v526
        %533 = vst [vmem:[%s261 + $0x28] sm:$0xff] %v526
        %534 = vst [vmem:[%s261 + $0x30] sm:$0xff] %v526
        %535 = vst [vmem:[%s261 + $0x38] sm:$0xff] %v526
      $region36: #{_conv2d_forward.2} parent=31 // pred_fallthru
        _
      %v536 = vld [vmem:[%s261] sm:$0xff]
      %v537 = vld [vmem:[%s261 + $0x8] sm:$0xff]
      %v538 = vld [vmem:[%s261 + $0x10] sm:$0xff]
      %v539 = vld [vmem:[%s261 + $0x18] sm:$0xff]
      %v540 = vld [vmem:[%s261 + $0x20] sm:$0xff]
      %v541 = vld [vmem:[%s261 + $0x28] sm:$0xff]
      %v542 = vld [vmem:[%s261 + $0x30] sm:$0xff]
      %v543 = vld [vmem:[%s261 + $0x38] sm:$0xff]
      %v544 = vld [vmem:[%s239] sm:$0xf]
      %v545 = vld [vmem:[%s239 + $0x4] sm:$0xf]
      %v546 = vld [vmem:[%s239 + $0x8] sm:$0xf]
      %v547 = vld [vmem:[%s239 + $0xc] sm:$0xf]
      %v548 = vld [vmem:[%s239 + $0x10] sm:$0xf]
      %v549 = vld [vmem:[%s239 + $0x14] sm:$0xf]
      %v550 = vld [vmem:[%s239 + $0x18] sm:$0xf]
      %v551 = vld [vmem:[%s239 + $0x1c] sm:$0xf]
      %v552 = vld [vmem:[#allocation12] sm:$0xf]
      %v553 = vld [vmem:[#allocation12 + $0x4] sm:$0xf]
      %v554 = vld [vmem:[#allocation12 + $0x8] sm:$0xf]
      %v555 = vld [vmem:[#allocation12 + $0xc] sm:$0xf]
      %v556 = vld [vmem:[#allocation12 + $0x10] sm:$0xf]
      %v557 = vld [vmem:[#allocation12 + $0x14] sm:$0xf]
      %v558 = vld [vmem:[#allocation12 + $0x18] sm:$0xf]
      %v559 = vld [vmem:[#allocation12 + $0x1c] sm:$0xf]
      %v568 = vunpack.c.l.b16 %v544
      %v569 = vunpack.c.l.b16 %v545
      %v570 = vunpack.c.l.b16 %v546
      %v571 = vunpack.c.l.b16 %v547
      %v572 = vunpack.c.l.b16 %v548
      %v573 = vunpack.c.l.b16 %v549
      %v574 = vunpack.c.l.b16 %v550
      %v575 = vunpack.c.l.b16 %v551
      %v576 = vpack.c.b16 %v569, %v568
      %v577 = vpack.c.b16 %v571, %v570
      %v578 = vpack.c.b16 %v573, %v572
      %v579 = vpack.c.b16 %v575, %v574
      %v588 = vunpack.c.l.b16 %v552
      %v589 = vunpack.c.l.b16 %v553
      %v590 = vunpack.c.l.b16 %v554
      %v591 = vunpack.c.l.b16 %v555
      %v592 = vunpack.c.l.b16 %v556
      %v593 = vunpack.c.l.b16 %v557
      %v594 = vunpack.c.l.b16 %v558
      %v595 = vunpack.c.l.b16 %v559
      %v596 = vpack.c.b16 %v589, %v588
      %v597 = vpack.c.b16 %v591, %v590
      %v598 = vpack.c.b16 %v593, %v592
      %v599 = vpack.c.b16 %v595, %v594
      %vm604 = vcmask 523264
      %v606 = vsel %vm604, %v576, 0
      %v609 = vsel %vm604, %v577, 0
      %v612 = vsel %vm604, %v578, 0
      %v615 = vsel %vm604, %v579, 0
      %617 = vmatprep.subr.bf16.mxu0 0
      %618 = vmatpush1.bf16.msra.mxu0 %v596
      %619 = vmatprep.subr.bf16.mxu0 0
      %620 = vmatpush1.bf16.msra.mxu0 %v597
      %621 = vmatprep.subr.bf16.mxu0 0
      %622 = vmatpush1.bf16.msra.mxu0 %v598
      %623 = vmatprep.subr.bf16.mxu0 0
      %624 = vmatpush1.bf16.msra.mxu0 %v599
      %625 = vmatprep.subr.bf16.mxu0 0
      %626 = vmatpush1.bf16.msra.mxu0 0
      %627 = vmatprep.subr.bf16.mxu0 0
      %628 = vmatpush1.bf16.msra.mxu0 0
      %629 = vmatprep.subr.bf16.mxu0 0
      %630 = vmatpush1.bf16.msra.mxu0 0
      %631 = vmatprep.subr.bf16.mxu0 0
      %632 = vmatpush1.bf16.msra.mxu0 0
      %633 = vmatprep.subr.bf16.mxu0 0
      %634 = vmatpush1.bf16.msra.mxu0 0
      %635 = vmatprep.subr.bf16.mxu0 0
      %636 = vmatpush1.bf16.msra.mxu0 0
      %637 = vmatprep.subr.bf16.mxu0 0
      %638 = vmatpush1.bf16.msra.mxu0 0
      %639 = vmatprep.subr.bf16.mxu0 0
      %640 = vmatpush1.bf16.msra.mxu0 0
      %641 = vmatprep.subr.bf16.mxu0 0
      %642 = vmatpush1.bf16.msra.mxu0 0
      %643 = vmatprep.subr.bf16.mxu0 0
      %644 = vmatpush1.bf16.msra.mxu0 0
      %645 = vmatprep.subr.bf16.mxu0 0
      %646 = vmatpush1.bf16.msra.mxu0 0
      %647 = vmatprep.subr.bf16.mxu0 0
      %648 = vmatpush1.bf16.msra.mxu0 0
      %649 = vmatprep.mubr.bf16.mxu0 0
      %650 = vmatmul.mubr.bf16.gmra.mrb[0].mxu0 %v606
      %v651 = vpop.f32.mrb[0].mxu0
      %v652 = vadd.f32 0.0, %v651
      %v653 = vpop.f32.mrb[0].mxu0
      %v654 = vpop.f32.mrb[0].mxu0
      %v655 = vadd.f32 0.0, %v654
      %v656 = vpop.f32.mrb[0].mxu0
      %657 = vmatprep.mubr.bf16.mxu0 0
      %658 = vmatmul.mubr.bf16.gmra.mrb[0].mxu0 %v609
      %v659 = vpop.f32.mrb[0].mxu0
      %v660 = vadd.f32 0.0, %v659
      %v661 = vpop.f32.mrb[0].mxu0
      %v662 = vpop.f32.mrb[0].mxu0
      %v663 = vadd.f32 0.0, %v662
      %v664 = vpop.f32.mrb[0].mxu0
      %665 = vmatprep.mubr.bf16.mxu0 0
      %666 = vmatmul.mubr.bf16.gmra.mrb[0].mxu0 %v612
      %v667 = vpop.f32.mrb[0].mxu0
      %v668 = vadd.f32 0.0, %v667
      %v669 = vpop.f32.mrb[0].mxu0
      %v670 = vpop.f32.mrb[0].mxu0
      %v671 = vadd.f32 0.0, %v670
      %v672 = vpop.f32.mrb[0].mxu0
      %673 = vmatprep.mubr.bf16.mxu0 0
      %674 = vmatmul.mubr.bf16.gmra.mrb[0].mxu0 %v615
      %v675 = vpop.f32.mrb[0].mxu0
      %v676 = vadd.f32 0.0, %v675
      %v677 = vpop.f32.mrb[0].mxu0
      %v678 = vpop.f32.mrb[0].mxu0
      %v679 = vadd.f32 0.0, %v678
      %v680 = vpop.f32.mrb[0].mxu0
      %681 = vdwg.mxu0
      %v682 = vadd.f32 %v536, %v652
      %v683 = vadd.f32 %v537, %v655
      %v684 = vadd.f32 %v538, %v660
      %v685 = vadd.f32 %v539, %v663
      %v686 = vadd.f32 %v540, %v668
      %v687 = vadd.f32 %v541, %v671
      %v688 = vadd.f32 %v542, %v676
      %v689 = vadd.f32 %v543, %v679
      %690 = vst [vmem:[%s261] sm:$0xff] %v682
      %691 = vst [vmem:[%s261 + $0x8] sm:$0xff] %v683
      %692 = vst [vmem:[%s261 + $0x10] sm:$0xff] %v684
      %693 = vst [vmem:[%s261 + $0x18] sm:$0xff] %v685
      %694 = vst [vmem:[%s261 + $0x20] sm:$0xff] %v686
      %695 = vst [vmem:[%s261 + $0x28] sm:$0xff] %v687
      %696 = vst [vmem:[%s261 + $0x30] sm:$0xff] %v688
      %697 = vst [vmem:[%s261 + $0x38] sm:$0xff] %v689
      %s698 = smul.u32 8, %s27
      %p699 = scmp.lt.s32.totalorder %s698, 15
      %s700 = scalar_select %p699, %s698, 15
      %p701 = scmp.lt.s32.totalorder %s28, 0
      %s702 = scalar_select %p701, %s28, 0
      %s703 = sadd.s32 %s702, %s700
      %s704 = smul.addr %s703, 8
      %s705 = scalar_lea.vmem %s5, %s704
      // Predicated region
      $region37: #{_conv2d_forward.2} parent=31 // pred_check
        %p706 = pneg %p138
      $region38: #{_conv2d_forward.2} parent=31 // pred_check_branch
        %708 = sbr.rel (%p706) target = $region40
      $region39: #{_conv2d_forward.2} parent=31 // pred_region
        %s709 = smul.u32 8, %s27
      $region40: #{_conv2d_forward.2} parent=31 // pred_fallthru
        _
    $region32: #{_conv2d_forward.2} parent=5 // pred_fallthru
      _
    %p710 = scmp.le.s32.totalorder 2, %s17
    // Predicated region
    $region41: #{_conv2d_forward.2} parent=5 // pred_check
      %p711 = pneg %p710
    $region42: #{_conv2d_forward.2} parent=5 // pred_check_branch
      %713 = sbr.rel (%p711) target = $region44
    $region43: #{_conv2d_forward.2} parent=5 // pred_region
      %s714 = ssub.s32 %s17, 2
      // Predicated region
      $region45: #{_conv2d_forward.2} parent=43 // pred_check
        %p715 = pneg %p144
      $region46: #{_conv2d_forward.2} parent=43 // pred_check_branch
        %717 = sbr.rel (%p715) target = $region48
      $region47: #{_conv2d_forward.2} parent=43 // pred_region
        %s718 = smul.u32 8, %s30
        %p719 = scmp.lt.s32.totalorder %s718, 15
        %s720 = scalar_select %p719, %s718, 15
        %p721 = scmp.lt.s32.totalorder %s31, 0
        %s722 = scalar_select %p721, %s31, 0
        %s723 = sadd.s32 %s722, %s720
        %s724 = smul.addr %s723, 8
        %s725 = scalar_lea.vmem %s5, %s724
      $region48: #{_conv2d_forward.2} parent=43 // pred_fallthru
        _
    $region44: #{_conv2d_forward.2} parent=5 // pred_fallthru
      _
  $region6: #{_conv2d_forward.2} parent=0 // loop_footer
    %s21 = sadd.s32 1, %s17
  $region7: #{_conv2d_forward.2} parent=0 // loop_footer_branch
    %16 = sbr.rel target = $region3
  $region8: #{_conv2d_forward.2} parent=0 // loop_exit
    _

</llo_original>
